<compile_context>
chip_gen: v5e
topology: v5e:2x2
jax: 0.10.0
libtpu: 0.0.40
codegen_flags: <defaults>
</compile_context>

<pallas_src>
import functools

import jax
import jax.numpy as jnp
from jax.experimental import pallas as pl
from jax.experimental.pallas import tpu as pltpu

LANE = 128


def testnet_kernel(xT_ref, w0t_ref, w1t_ref, w2_ref, o_ref):
    xT = xT_ref[...]                      # (d, TB)      batch on lanes
    w0t = w0t_ref[...]                    # (neurons, d) pre-scaled, transposed
    d_in = xT.shape[0]

    # Layer 0: K = d (=2) is tiny -> unrolled VPU broadcast FMAs, skip the MXU.
    h = w0t[:, 0:1] * xT[0:1, :]                          # (neurons, TB)
    for k in range(1, d_in):
        h = h + w0t[:, k : k + 1] * xT[k : k + 1, :]
    h = jnp.maximum(h, 0.0)
    h = h * h                                             # relusq

    # Layer 1: (neurons, neurons) @ (neurons, TB) on the MXU.
    h = jnp.dot(w1t_ref[...], h, preferred_element_type=jnp.float32)
    h = jnp.maximum(h, 0.0)
    h = h * h                                             # relusq

    # Layer 2: single output column -> broadcast multiply + sublane reduce.
    y = jnp.sum(w2_ref[...] * h, axis=0, keepdims=True)   # (1, TB)
    o_ref[...] = y.astype(o_ref.dtype)


def _fold_wn(w, s):
    # column-wise L2 norm over dim 0 (matches torch.norm(w, dim=0, keepdim=True));
    # no epsilon, to match the PyTorch WN branch exactly.
    norm = jnp.sqrt(jnp.sum(w * w, axis=0, keepdims=True))
    return (s / norm) * w


@functools.partial(jax.jit, static_argnames=("tile_batch",))
def testnet_forward(x, w0, s0, w1, s1, w2, s2, *, tile_batch=16384):
    n, d_in = x.shape
    neurons = w0.shape[1]

    # Hoist the weight-norm scaling out of the per-tile path (done once here).
    w0t = _fold_wn(w0, s0).T              # (neurons, d)
    w1t = _fold_wn(w1, s1).T              # (neurons, neurons)
    w2e = _fold_wn(w2, s2)                # (neurons, 1)  keep as a column

    # Transpose to batch-on-lanes and pad the batch to a multiple of the tile.
    xT = x.T.astype(jnp.float32)          # (d, n)
    tb = min(tile_batch, pl.cdiv(n, LANE) * LANE)   # multiple of 128
    n_pad = pl.cdiv(n, tb) * tb
    if n_pad != n:
        xT = jnp.pad(xT, ((0, 0), (0, n_pad - n)))

    out = pl.pallas_call(
        testnet_kernel,
        out_shape=jax.ShapeDtypeStruct((1, n_pad), jnp.float32),
        grid=(n_pad // tb,),
        in_specs=[
            pl.BlockSpec((d_in, tb), lambda i: (0, i)),
            pl.BlockSpec((neurons, d_in), lambda i: (0, 0)),
            pl.BlockSpec((neurons, neurons), lambda i: (0, 0)),
            pl.BlockSpec((neurons, 1), lambda i: (0, 0)),
        ],
        out_specs=pl.BlockSpec((1, tb), lambda i: (0, i)),
        compiler_params=pltpu.CompilerParams(
            dimension_semantics=("parallel",),            # 2 TCs on v7x
            vmem_limit_bytes=32 * 1024 * 1024,            # fits v7x's 64 MiB VMEM
        ),
    )(xT, w0t, w1t, w2e)

    return out[0, :n][:, None]            # (n, 1), matching torch output shape


def init_params(key, d, neurons):
    """Deterministic init mirroring TestNet.__init__ (WN=True, exp_WN=False)."""
    k0, k1, k2 = jax.random.split(key, 3)

    w0 = jax.random.normal(k0, (d, neurons), dtype=jnp.float32)
    w0 = w0 / jnp.linalg.norm(w0, axis=0, keepdims=True)
    s0 = jnp.ones((1, neurons), dtype=jnp.float32)

    w1 = jax.random.normal(k1, (neurons, neurons), dtype=jnp.float32)
    w1 = w1 / jnp.linalg.norm(w1, axis=0, keepdims=True)
    s1 = jnp.ones((1, neurons), dtype=jnp.float32)

    w2 = jax.random.normal(k2, (neurons, 1), dtype=jnp.float32)
    w2 = w2 / jnp.linalg.norm(w2)
    s2 = jnp.ones((1, 1), dtype=jnp.float32)

    return w0, s0, w1, s1, w2, s2


def reference_forward(x, w0, s0, w1, s1, w2, s2):
    """Pure-JAX reference of the PyTorch forward (WN branch, act='relusq')."""
    def layer(x, w, s, last):
        norm = jnp.sqrt(jnp.sum(w * w, axis=0, keepdims=True))
        x = x @ ((s / norm) * w)
        if not last:
            x = jnp.maximum(x, 0.0) ** 2
        return x

    x = layer(x, w0, s0, False)
    x = layer(x, w1, s1, False)
    x = layer(x, w2, s2, True)
    return x


if __name__ == "__main__":
    d = 2
    neurons = 8

    key = jax.random.PRNGKey(0)
    kp, kx1, kx2 = jax.random.split(key, 3)
    params = init_params(kp, d, neurons)

    # Small shape consistent with the module (batch=8, d=2) -> single tile.
    x_small = jax.random.normal(kx1, (8, d), dtype=jnp.float32)
    out_small = jax.block_until_ready(testnet_forward(x_small, *params))
    ref_small = reference_forward(x_small, *params)
    assert out_small.shape == (8, 1)
    assert jnp.allclose(out_small, ref_small, atol=1e-5, rtol=1e-4)

    # Exercise the tiled / padded multi-grid-step path (batch not a multiple
    # of the tile): 333 rows, 128-wide tiles -> 3 grid steps + tail padding.
    x_tiled = jax.random.normal(kx2, (333, d), dtype=jnp.float32)
    out_tiled = jax.block_until_ready(
        testnet_forward(x_tiled, *params, tile_batch=128)
    )
    ref_tiled = reference_forward(x_tiled, *params)
    assert out_tiled.shape == (333, 1)
    assert jnp.allclose(out_tiled, ref_tiled, atol=1e-5, rtol=1e-4)

    print("KERNEL_OK")
</pallas_src>

<mosaic_0001>
module attributes {stable_mosaic.version = 11 : i64} {
  func.func @testnet_kernel(%arg0: i32, %arg1: memref<2x128xf32, #tpu.memory_space<vmem>>, %arg2: memref<8x2xf32, #tpu.memory_space<vmem>>, %arg3: memref<8x8xf32, #tpu.memory_space<vmem>>, %arg4: memref<8x1xf32, #tpu.memory_space<vmem>>, %arg5: memref<1x128xf32, #tpu.memory_space<vmem>>) attributes {dimension_semantics = [#tpu.dimension_semantics<parallel>], iteration_bounds = array<i64: 1>, scalar_prefetch = 0 : i64, scratch_operands = 0 : i64, tpu.core_type = #tpu.core_type<tc>, window_params = [{transform_indices = @transform_0, window_bounds = array<i64: 2, 128>}, {pipeline_mode = #tpu.pipeline_mode<synchronous>, transform_indices = @transform_1, window_bounds = array<i64: 8, 2>}, {pipeline_mode = #tpu.pipeline_mode<synchronous>, transform_indices = @transform_2, window_bounds = array<i64: 8, 8>}, {pipeline_mode = #tpu.pipeline_mode<synchronous>, transform_indices = @transform_3, window_bounds = array<i64: 8, 1>}, {transform_indices = @transform_4, window_bounds = array<i64: 1, 128>}]} {
    %c0 = arith.constant 0 : index
    %c0_0 = arith.constant 0 : index
    %0 = vector.load %arg1[%c0, %c0_0] : memref<2x128xf32, #tpu.memory_space<vmem>>, vector<2x128xf32>
    %c0_1 = arith.constant 0 : index
    %c0_2 = arith.constant 0 : index
    %1 = vector.load %arg2[%c0_1, %c0_2] : memref<8x2xf32, #tpu.memory_space<vmem>>, vector<8x2xf32>
    %2 = vector.extract_strided_slice %1 {offsets = [0, 0], sizes = [8, 1], strides = [1, 1]} : vector<8x2xf32> to vector<8x1xf32>
    %3 = vector.extract_strided_slice %0 {offsets = [0, 0], sizes = [1, 128], strides = [1, 1]} : vector<2x128xf32> to vector<1x128xf32>
    %4 = vector.broadcast %2 : vector<8x1xf32> to vector<8x128xf32>
    %5 = vector.broadcast %3 : vector<1x128xf32> to vector<8x128xf32>
    %6 = arith.mulf %4, %5 : vector<8x128xf32>
    %7 = vector.extract_strided_slice %1 {offsets = [0, 1], sizes = [8, 1], strides = [1, 1]} : vector<8x2xf32> to vector<8x1xf32>
    %8 = vector.extract_strided_slice %0 {offsets = [1, 0], sizes = [1, 128], strides = [1, 1]} : vector<2x128xf32> to vector<1x128xf32>
    %9 = vector.broadcast %7 : vector<8x1xf32> to vector<8x128xf32>
    %10 = vector.broadcast %8 : vector<1x128xf32> to vector<8x128xf32>
    %11 = arith.mulf %9, %10 : vector<8x128xf32>
    %12 = arith.addf %6, %11 : vector<8x128xf32>
    %cst = arith.constant 0.000000e+00 : f32
    %13 = vector.broadcast %cst : f32 to vector<8x128xf32>
    %14 = arith.maximumf %12, %13 : vector<8x128xf32>
    %15 = arith.mulf %14, %14 : vector<8x128xf32>
    %c0_3 = arith.constant 0 : index
    %c0_4 = arith.constant 0 : index
    %16 = vector.load %arg3[%c0_3, %c0_4] : memref<8x8xf32, #tpu.memory_space<vmem>>, vector<8x8xf32>
    %cst_5 = arith.constant dense<0.000000e+00> : vector<8x128xf32>
    %17 = tpu.matmul %16, %15, %cst_5 {dimension_numbers = #tpu.dot_dimension_numbers<[1], [0], [0], [1], [0, 0, 1, 1], [], []>} : vector<8x8xf32>, vector<8x128xf32>, vector<8x128xf32> -> vector<8x128xf32>
    %cst_6 = arith.constant 0.000000e+00 : f32
    %18 = vector.broadcast %cst_6 : f32 to vector<8x128xf32>
    %19 = arith.maximumf %17, %18 : vector<8x128xf32>
    %20 = arith.mulf %19, %19 : vector<8x128xf32>
    %c0_7 = arith.constant 0 : index
    %c0_8 = arith.constant 0 : index
    %21 = vector.load %arg4[%c0_7, %c0_8] : memref<8x1xf32, #tpu.memory_space<vmem>>, vector<8x1xf32>
    %22 = vector.broadcast %21 : vector<8x1xf32> to vector<8x128xf32>
    %23 = arith.mulf %22, %20 : vector<8x128xf32>
    %cst_9 = arith.constant dense<0.000000e+00> : vector<128xf32>
    %24 = vector.multi_reduction <add>, %23, %cst_9 [0] : vector<8x128xf32> to vector<128xf32>
    %25 = vector.shape_cast %24 : vector<128xf32> to vector<1x128xf32>
    %c0_10 = arith.constant 0 : index
    %c0_11 = arith.constant 0 : index
    %26 = vector.load %arg5[%c0_10, %c0_11] : memref<1x128xf32, #tpu.memory_space<vmem>>, vector<1x128xf32>
    tpu.vector_store %arg5[%c0_10, %c0_11], %25 {strides = array<i32>} : memref<1x128xf32, #tpu.memory_space<vmem>>, vector<1x128xf32>,
    return
  }
  func.func @transform_0(%arg0: i32) -> (i32, i32) {
    %c0_i32 = arith.constant 0 : i32
    %c0_i32_0 = arith.constant 0 : i32
    return %c0_i32, %arg0 : i32, i32
  }
  func.func @transform_1(%arg0: i32) -> (i32, i32) {
    %c0_i32 = arith.constant 0 : i32
    %c0_i32_0 = arith.constant 0 : i32
    %c0_i32_1 = arith.constant 0 : i32
    return %c0_i32, %c0_i32_0 : i32, i32
  }
  func.func @transform_2(%arg0: i32) -> (i32, i32) {
    %c0_i32 = arith.constant 0 : i32
    %c0_i32_0 = arith.constant 0 : i32
    %c0_i32_1 = arith.constant 0 : i32
    return %c0_i32, %c0_i32_0 : i32, i32
  }
  func.func @transform_3(%arg0: i32) -> (i32, i32) {
    %c0_i32 = arith.constant 0 : i32
    %c0_i32_0 = arith.constant 0 : i32
    %c0_i32_1 = arith.constant 0 : i32
    return %c0_i32, %c0_i32_0 : i32, i32
  }
  func.func @transform_4(%arg0: i32) -> (i32, i32) {
    %c0_i32 = arith.constant 0 : i32
    %c0_i32_0 = arith.constant 0 : i32
    return %c0_i32, %arg0 : i32, i32
  }
}

</mosaic_0001>

<llo_original>
// kernel: testnet_forward.1
$region0: #{testnet_forward.1}
  #allocation0 [shape = 'u32[]', space=smem, size = 0x4, offset = 0x4, fixed_abs, tag = 'smem constant byte address 0x4 - core index']
  #allocation1 [shape = 'u32[72,128]{1,0:T(1,128)}', space=vmem, size = 0x9000, scoped, tag = 'internal scratch']
  %s0 = inlined_call_operand.vmem [shape: f32[2,128], index: 0, kind: input, shape index: {}]
  %s1 = inlined_call_operand.vmem [shape: f32[8,2], index: 1, kind: input, shape index: {}]
  %s2 = inlined_call_operand.vmem [shape: f32[8,8], index: 2, kind: input, shape index: {}]
  %s3 = inlined_call_operand.vmem [shape: f32[8,1], index: 3, kind: input, shape index: {}]
  %s4 = inlined_call_operand.vmem [shape: f32[1,128], index: 4, kind: output, shape index: {}]
  %s5 = sld [smem:[#allocation0]]
  $region26: #{testnet_forward.1} parent=0
    _
  %s7 = ssub.s32 1, %s5
  %s8 = scalar_select 0, %s7, %s5
  // Predicated region
  $region2: #{testnet_forward.1} parent=0 // pred_check
    _
  $region3: #{testnet_forward.1} parent=0 // pred_check_branch
    %10 = sbr.rel (0) target = $region5
  $region4: #{testnet_forward.1} parent=0 // pred_region
    _
  $region5: #{testnet_forward.1} parent=0 // pred_fallthru
    _
  // Predicated region
  $region6: #{testnet_forward.1} parent=0 // pred_check
    _
  $region7: #{testnet_forward.1} parent=0 // pred_check_branch
    %12 = sbr.rel (0) target = $region9
  $region8: #{testnet_forward.1} parent=0 // pred_region
    _
  $region9: #{testnet_forward.1} parent=0 // pred_fallthru
    _
  // Predicated region
  $region10: #{testnet_forward.1} parent=0 // pred_check
    _
  $region11: #{testnet_forward.1} parent=0 // pred_check_branch
    %14 = sbr.rel (0) target = $region13
  $region12: #{testnet_forward.1} parent=0 // pred_region
    _
  $region13: #{testnet_forward.1} parent=0 // pred_fallthru
    _
  // Predicated region
  $region14: #{testnet_forward.1} parent=0 // pred_check
    _
  $region15: #{testnet_forward.1} parent=0 // pred_check_branch
    %16 = sbr.rel (0) target = $region17
  $region16: #{testnet_forward.1} parent=0 // pred_region
    _
  $region17: #{testnet_forward.1} parent=0 // pred_fallthru
    _
  %v17 = vld [vmem:[%s0] sm:$0x3]
  %v18 = vld [vmem:[%s1] sm:$0xff]
  %20 = vset.pattern.permute.xlu0 0
  %21 = vperm.xlu0 %20, %v18
  %v22 = vpop.permute.xlu0 %21
  %v24 = vperm.slane %v17, 0
  %v25 = vmul.f32 %v22, %v24
  %26 = vset.pattern.permute.xlu0 1
  %27 = vperm.xlu0 %26, %v18
  %v28 = vpop.permute.xlu0 %27
  %v30 = vperm.slane %v17, 1
  %v31 = vmul.f32 %v28, %v30
  %v32 = vadd.f32 %v25, %v31
  %v33 = vmax.f32 %v32, 0.0
  %v34 = vmul.f32 %v33, %v33
  %v35 = vld [vmem:[%s2] sm:$0xff]
  %vm36 = vcmask 64512
  %v38 = vsel %vm36, %v35, 0
  %40 = vmatpush.msra.mxu0 0.0
  %41 = vmatpush.msra.mxu0 0.0
  %42 = vmatpush.msra.mxu0 0.0
  %43 = vmatpush.msra.mxu0 0.0
  %44 = vmatpush.msra.mxu0 0.0
  %45 = vmatpush.msra.mxu0 0.0
  %46 = vmatpush.msra.mxu0 0.0
  %47 = vmatpush.msra.mxu0 0.0
  %48 = vmatpush.msra.mxu0 0.0
  %49 = vmatpush.msra.mxu0 0.0
  %50 = vmatpush.msra.mxu0 0.0
  %51 = vmatpush.msra.mxu0 0.0
  %52 = vmatpush.msra.mxu0 0.0
  %53 = vmatpush.msra.mxu0 0.0
  %54 = vmatpush.msra.mxu0 0.0
  %55 = vmatpush.msra.mxu0 %v34
  %56 = vmatmul.f32.gmra.mxu0 %v38
  %v57 = vpop.f32.mrf.mxu0
  %v58 = vadd.f32 0.0, %v57
  %59 = vdwg.mxu0
  %v60 = vmax.f32 %v58, 0.0
  %v61 = vmul.f32 %v60, %v60
  %v62 = vld [vmem:[%s3] sm:$0xff]
  %64 = vset.pattern.permute.xlu0 0
  %65 = vperm.xlu0 %64, %v62
  %v66 = vpop.permute.xlu0 %65
  %v68 = vmul.f32 %v66, %v61
  %v69 = vrot.slane %v68, 4
  %v70 = vadd.f32 %v68, %v69
  %v71 = vrot.slane %v70, 2
  %v72 = vadd.f32 %v70, %v71
  %v73 = vrot.slane %v72, 1
  %v74 = vadd.f32 %v72, %v73
  %75 = vst [vmem:[%s4] sm:$0x1] %v74
  // Predicated region
  $region18: #{testnet_forward.1} parent=0 // pred_check
    _
  $region19: #{testnet_forward.1} parent=0 // pred_check_branch
    %77 = sbr.rel (0) target = $region21
  $region20: #{testnet_forward.1} parent=0 // pred_region
    _
  $region21: #{testnet_forward.1} parent=0 // pred_fallthru
    _
  // Predicated region
  $region22: #{testnet_forward.1} parent=0 // pred_check
    _
  $region23: #{testnet_forward.1} parent=0 // pred_check_branch
    %79 = sbr.rel (0) target = $region25
  $region24: #{testnet_forward.1} parent=0 // pred_region
    _
  $region25: #{testnet_forward.1} parent=0 // pred_fallthru
    _

</llo_original>
